<compile_context>
chip_gen: v6e
topology: v6e:2x2x1
jax: 0.10.0
libtpu: 0.0.40
codegen_flags: <defaults>
</compile_context>

<pallas_src>
import jax
import jax.numpy as jnp
from jax.experimental import pallas as pl
from jax.experimental.pallas import tpu as pltpu


def _interprinter_kernel(x_ref, w_att_ref, w_fc_ref, b_fc_ref, o_ref, pooled_ref):
    # x_ref block: [TN, C, HW]  (channels on sublanes, spatial on lanes)
    tn, c, hw = x_ref.shape
    x = x_ref[...]

    # --- neko_att_ap 1x1 conv: attention logits [TN, 1, HW] (lane-dense) ---
    w_att = jnp.broadcast_to(w_att_ref[...], (tn, 1, c))          # [TN, 1, C]
    logits = jnp.einsum("noc,nch->noh", w_att, x,
                        preferred_element_type=jnp.float32)       # [TN, 1, HW] f32
    # (conv bias omitted: softmax over HW is shift-invariant)

    # --- softmax over the spatial (lane) axis, f32 ---
    m = jnp.max(logits, axis=-1, keepdims=True)                   # [TN, 1, 1]
    e = jnp.exp(logits - m)                                       # [TN, 1, HW]
    s = jnp.sum(e, axis=-1, keepdims=True)                        # [TN, 1, 1]

    # --- attention-weighted spatial pooling on the MXU, normalize after ---
    pooled = jnp.einsum("noh,nch->noc", e, x,
                        preferred_element_type=jnp.float32)       # [TN, 1, C]
    pooled = pooled * pl.reciprocal(s, approx=False)              # TN scalars only

    # pack the TN pooled rows into a sublane-dense [TN, C] tile via scratch
    for i in range(tn):                                           # static unroll
        pooled_ref[pl.ds(i, 1), :] = pooled[i]                    # (1, C) row store
    pooled2 = pooled_ref[...]                                     # [TN, C] f32

    # --- nn.Linear(C, C): pooled @ W^T + b  (w_fc passed pre-transposed) ---
    out = jnp.dot(pooled2, w_fc_ref[...],
                  preferred_element_type=jnp.float32)             # [TN, C]
    out = out + b_fc_ref[...]
    o_ref[...] = out.astype(o_ref.dtype)


def _pick_batch_tile(n):
    # Output block second-minor dim must be a multiple of 8 or the full dim.
    # Whole batch for small N; otherwise 8 rows per step when divisible
    # (>= 2 parallel steps also helps v7x's 2 TensorCores).
    if n <= 8 or n % 8 != 0:
        return n
    return 8


def neko_weird_visual_only_interprinter_fwd(vp_nchw, w_att, b_att, w_fc, b_fc):
    """vp_nchw: [N, C, H, W] backbone feature map (f32 or bf16).
    w_att: [1, C, 1, 1] conv1x1 weight; b_att: [1] (mathematical no-op here).
    w_fc:  [C, C] nn.Linear weight ([out, in]); b_fc: [C].
    returns: [N, C] in vp_nchw.dtype.
    """
    del b_att  # softmax is shift-invariant to a scalar added to all logits
    N, C, H, W = vp_nchw.shape
    HW = H * W

    x = vp_nchw.reshape(N, C, HW)          # free reshape, no transpose / no cast
    w_att_row = w_att.reshape(1, C)        # [1, C]
    w_fc_t = w_fc.T                        # [C_in, C_out] (tiny host transpose)
    b_fc_row = b_fc.reshape(1, C)          # [1, C]

    tn = _pick_batch_tile(N)
    grid = (N // tn,)

    # NOTE: at large C/HW on v7x (64 MiB VMEM), cap vmem_limit_bytes and
    # consider single-buffering the constant [C, C] weight spec.
    out = pl.pallas_call(
        _interprinter_kernel,
        out_shape=jax.ShapeDtypeStruct((N, C), vp_nchw.dtype),
        grid_spec=pltpu.PrefetchScalarGridSpec(
            num_scalar_prefetch=0,
            grid=grid,
            in_specs=[
                pl.BlockSpec((tn, C, HW), lambda n: (n, 0, 0)),   # NCHW tile
                pl.BlockSpec((1, C), lambda n: (0, 0)),           # att conv weight
                pl.BlockSpec((C, C), lambda n: (0, 0)),           # fc weight (T)
                pl.BlockSpec((1, C), lambda n: (0, 0)),           # fc bias
            ],
            out_specs=pl.BlockSpec((tn, C), lambda n: (n, 0)),
            scratch_shapes=[pltpu.VMEM((tn, C), jnp.float32)],
        ),
        compiler_params=pltpu.CompilerParams(
            dimension_semantics=("parallel",)),
    )(x, w_att_row, w_fc_t, b_fc_row)
    return out


def _reference_fwd(vp_nchw, w_att, b_att, w_fc, b_fc):
    N, C, H, W = vp_nchw.shape
    x = vp_nchw.astype(jnp.float32)
    logits = jnp.einsum("nchw,c->nhw", x, w_att.reshape(C).astype(jnp.float32))
    logits = logits + b_att.astype(jnp.float32)[0]
    att = jax.nn.softmax(logits.reshape(N, -1), axis=-1).reshape(N, H, W)
    pooled = jnp.einsum("nhw,nchw->nc", att, x)
    return pooled @ w_fc.astype(jnp.float32).T + b_fc.astype(jnp.float32)


if __name__ == "__main__":
    key = jax.random.PRNGKey(0)
    k_vp, k_wa, k_ba, k_wf, k_bf = jax.random.split(key, 5)

    def make_args(N, C, H, W, dtype):
        vp = jax.random.normal(k_vp, (N, C, H, W), dtype=jnp.float32)
        w_att = 0.1 * jax.random.normal(k_wa, (1, C, 1, 1), dtype=jnp.float32)
        b_att = 0.1 * jax.random.normal(k_ba, (1,), dtype=jnp.float32)
        w_fc = 0.1 * jax.random.normal(k_wf, (C, C), dtype=jnp.float32)
        b_fc = 0.1 * jax.random.normal(k_bf, (C,), dtype=jnp.float32)
        return tuple(a.astype(dtype) for a in (vp, w_att, b_att, w_fc, b_fc))

    # case 1: tiny batch, f32 (whole batch in a single grid step)
    args = make_args(2, 32, 8, 8, jnp.float32)
    out = jax.block_until_ready(neko_weird_visual_only_interprinter_fwd(*args))
    ref = _reference_fwd(*args)
    assert out.shape == (2, 32)
    assert jnp.allclose(out, ref, atol=1e-4, rtol=1e-4), "f32 small-batch mismatch"

    # case 2: multi-step grid (N=16 -> 2 parallel steps of 8 rows), f32
    args = make_args(16, 32, 8, 8, jnp.float32)
    out = jax.block_until_ready(neko_weird_visual_only_interprinter_fwd(*args))
    ref = _reference_fwd(*args)
    assert out.shape == (16, 32)
    assert jnp.allclose(out, ref, atol=1e-4, rtol=1e-4), "f32 tiled mismatch"

    # case 3: bf16 storage (halved HBM traffic), f32 accumulation in-kernel
    args = make_args(2, 32, 8, 8, jnp.bfloat16)
    out = jax.block_until_ready(neko_weird_visual_only_interprinter_fwd(*args))
    ref = _reference_fwd(*args)
    assert jnp.allclose(out.astype(jnp.float32), ref, atol=1e-2, rtol=1e-2), \
        "bf16 mismatch"

    print("KERNEL_OK")
</pallas_src>

<mosaic_0001>
module attributes {stable_mosaic.version = 11 : i64} {
  func.func @_interprinter_kernel(%arg0: i32, %arg1: memref<2x32x64xf32, #tpu.memory_space<vmem>>, %arg2: memref<1x32xf32, #tpu.memory_space<vmem>>, %arg3: memref<32x32xf32, #tpu.memory_space<vmem>>, %arg4: memref<1x32xf32, #tpu.memory_space<vmem>>, %arg5: memref<2x32xf32, #tpu.memory_space<vmem>>, %arg6: memref<2x32xf32, #tpu.memory_space<vmem>>) attributes {dimension_semantics = [#tpu.dimension_semantics<parallel>], iteration_bounds = array<i64: 1>, scalar_prefetch = 0 : i64, scratch_operands = 1 : i64, tpu.core_type = #tpu.core_type<tc>, window_params = [{transform_indices = @transform_0, window_bounds = array<i64: 2, 32, 64>}, {pipeline_mode = #tpu.pipeline_mode<synchronous>, transform_indices = @transform_1, window_bounds = array<i64: 1, 32>}, {pipeline_mode = #tpu.pipeline_mode<synchronous>, transform_indices = @transform_2, window_bounds = array<i64: 32, 32>}, {pipeline_mode = #tpu.pipeline_mode<synchronous>, transform_indices = @transform_3, window_bounds = array<i64: 1, 32>}, {transform_indices = @transform_4, window_bounds = array<i64: 2, 32>}]} {
    %c0 = arith.constant 0 : index
    %c0_0 = arith.constant 0 : index
    %c0_1 = arith.constant 0 : index
    %0 = vector.load %arg1[%c0, %c0_0, %c0_1] : memref<2x32x64xf32, #tpu.memory_space<vmem>>, vector<2x32x64xf32>
    %c0_2 = arith.constant 0 : index
    %c0_3 = arith.constant 0 : index
    %1 = vector.load %arg2[%c0_2, %c0_3] : memref<1x32xf32, #tpu.memory_space<vmem>>, vector<1x32xf32>
    %2 = vector.shape_cast %1 : vector<1x32xf32> to vector<1x1x32xf32>
    %3 = vector.broadcast %2 : vector<1x1x32xf32> to vector<2x1x32xf32>
    "tpu.trace_start"() <{level = 10 : i32, message = "noc,nch->noh"}> : () -> ()
    %cst = arith.constant dense<0.000000e+00> : vector<2x1x64xf32>
    %4 = tpu.matmul %3, %0, %cst {dimension_numbers = #tpu.dot_dimension_numbers<[2], [1], [1], [2], [0, 0, 0, 1, 1, 2], [0], [0]>} : vector<2x1x32xf32>, vector<2x32x64xf32>, vector<2x1x64xf32> -> vector<2x1x64xf32>
    "tpu.trace_stop"() : () -> ()
    %cst_4 = arith.constant dense<0xFF800000> : vector<2x1xf32>
    %5 = vector.multi_reduction <maximumf>, %4, %cst_4 [2] : vector<2x1x64xf32> to vector<2x1xf32>
    %6 = vector.shape_cast %5 : vector<2x1xf32> to vector<2x1x1xf32>
    %7 = vector.broadcast %6 : vector<2x1x1xf32> to vector<2x1x64xf32>
    %8 = arith.subf %4, %7 : vector<2x1x64xf32>
    %9 = math.exp %8 : vector<2x1x64xf32>
    %cst_5 = arith.constant dense<0.000000e+00> : vector<2x1xf32>
    %10 = vector.multi_reduction <add>, %9, %cst_5 [2] : vector<2x1x64xf32> to vector<2x1xf32>
    %11 = vector.shape_cast %10 : vector<2x1xf32> to vector<2x1x1xf32>
    "tpu.trace_start"() <{level = 10 : i32, message = "noh,nch->noc"}> : () -> ()
    %cst_6 = arith.constant dense<0.000000e+00> : vector<2x1x32xf32>
    %12 = tpu.matmul %9, %0, %cst_6 {dimension_numbers = #tpu.dot_dimension_numbers<[2], [2], [1], [1], [0, 0, 0, 1, 1, 1], [0], [0]>} : vector<2x1x64xf32>, vector<2x32x64xf32>, vector<2x1x32xf32> -> vector<2x1x32xf32>
    "tpu.trace_stop"() : () -> ()
    %13 = tpu.reciprocal %11 : vector<2x1x1xf32> -> vector<2x1x1xf32>
    %14 = vector.broadcast %13 : vector<2x1x1xf32> to vector<2x1x32xf32>
    %15 = arith.mulf %12, %14 : vector<2x1x32xf32>
    %16 = vector.extract_strided_slice %15 {offsets = [0, 0, 0], sizes = [1, 1, 32], strides = [1, 1, 1]} : vector<2x1x32xf32> to vector<1x1x32xf32>
    %17 = vector.shape_cast %16 : vector<1x1x32xf32> to vector<1x32xf32>
    %c0_7 = arith.constant 0 : index
    %c0_8 = arith.constant 0 : index
    %18 = vector.load %arg6[%c0_7, %c0_8] : memref<2x32xf32, #tpu.memory_space<vmem>>, vector<1x32xf32>
    tpu.vector_store %arg6[%c0_7, %c0_8], %17 {strides = array<i32>} : memref<2x32xf32, #tpu.memory_space<vmem>>, vector<1x32xf32>,
    %19 = vector.extract_strided_slice %15 {offsets = [1, 0, 0], sizes = [1, 1, 32], strides = [1, 1, 1]} : vector<2x1x32xf32> to vector<1x1x32xf32>
    %20 = vector.shape_cast %19 : vector<1x1x32xf32> to vector<1x32xf32>
    %c1 = arith.constant 1 : index
    %c0_9 = arith.constant 0 : index
    %21 = vector.load %arg6[%c1, %c0_9] : memref<2x32xf32, #tpu.memory_space<vmem>>, vector<1x32xf32>
    tpu.vector_store %arg6[%c1, %c0_9], %20 {strides = array<i32>} : memref<2x32xf32, #tpu.memory_space<vmem>>, vector<1x32xf32>,
    %c0_10 = arith.constant 0 : index
    %c0_11 = arith.constant 0 : index
    %22 = vector.load %arg6[%c0_10, %c0_11] : memref<2x32xf32, #tpu.memory_space<vmem>>, vector<2x32xf32>
    %c0_12 = arith.constant 0 : index
    %c0_13 = arith.constant 0 : index
    %23 = vector.load %arg3[%c0_12, %c0_13] : memref<32x32xf32, #tpu.memory_space<vmem>>, vector<32x32xf32>
    %cst_14 = arith.constant dense<0.000000e+00> : vector<2x32xf32>
    %24 = tpu.matmul %22, %23, %cst_14 {dimension_numbers = #tpu.dot_dimension_numbers<[1], [0], [0], [1], [0, 0, 1, 1], [], []>} : vector<2x32xf32>, vector<32x32xf32>, vector<2x32xf32> -> vector<2x32xf32>
    %c0_15 = arith.constant 0 : index
    %c0_16 = arith.constant 0 : index
    %25 = vector.load %arg4[%c0_15, %c0_16] : memref<1x32xf32, #tpu.memory_space<vmem>>, vector<1x32xf32>
    %26 = vector.broadcast %25 : vector<1x32xf32> to vector<2x32xf32>
    %27 = arith.addf %24, %26 : vector<2x32xf32>
    %c0_17 = arith.constant 0 : index
    %c0_18 = arith.constant 0 : index
    %28 = vector.load %arg5[%c0_17, %c0_18] : memref<2x32xf32, #tpu.memory_space<vmem>>, vector<2x32xf32>
    tpu.vector_store %arg5[%c0_17, %c0_18], %27 {strides = array<i32>} : memref<2x32xf32, #tpu.memory_space<vmem>>, vector<2x32xf32>,
    return
  }
  func.func @transform_0(%arg0: i32) -> (i32, i32, i32) {
    %c0_i32 = arith.constant 0 : i32
    %c0_i32_0 = arith.constant 0 : i32
    %c0_i32_1 = arith.constant 0 : i32
    return %arg0, %c0_i32, %c0_i32_0 : i32, i32, i32
  }
  func.func @transform_1(%arg0: i32) -> (i32, i32) {
    %c0_i32 = arith.constant 0 : i32
    %c0_i32_0 = arith.constant 0 : i32
    %c0_i32_1 = arith.constant 0 : i32
    return %c0_i32, %c0_i32_0 : i32, i32
  }
  func.func @transform_2(%arg0: i32) -> (i32, i32) {
    %c0_i32 = arith.constant 0 : i32
    %c0_i32_0 = arith.constant 0 : i32
    %c0_i32_1 = arith.constant 0 : i32
    return %c0_i32, %c0_i32_0 : i32, i32
  }
  func.func @transform_3(%arg0: i32) -> (i32, i32) {
    %c0_i32 = arith.constant 0 : i32
    %c0_i32_0 = arith.constant 0 : i32
    %c0_i32_1 = arith.constant 0 : i32
    return %c0_i32, %c0_i32_0 : i32, i32
  }
  func.func @transform_4(%arg0: i32) -> (i32, i32) {
    %c0_i32 = arith.constant 0 : i32
    %c0_i32_0 = arith.constant 0 : i32
    return %arg0, %c0_i32 : i32, i32
  }
}

</mosaic_0001>

<llo_original>
// kernel: tpu_custom_call.1
$region0: #{tpu_custom_call.1}
  #allocation0 [shape = 'u32[]', space=smem, size = 0x4, offset = 0x4, fixed_abs, tag = 'smem constant byte address 0x4 - core index']
  #allocation1 [shape = 'u32[144,128]{1,0:T(1,128)}', space=vmem, size = 0x12000, scoped, tag = 'internal scratch']
  #allocation2 [shape = 'f32[2,32]{1,0:T(2,128)}', space=vmem, size = 0x400, scoped, tag = 'scratch operand']
  %s0 = inlined_call_operand.hbm [shape: f32[2,32,64], index: 0, kind: input, shape index: {}]
  %s1 = inlined_call_operand.vmem [shape: f32[1,32], index: 1, kind: input, shape index: {}]
  %s2 = inlined_call_operand.hbm [shape: f32[32,32], index: 2, kind: input, shape index: {}]
  %s3 = inlined_call_operand.vmem [shape: f32[1,32], index: 3, kind: input, shape index: {}]
  %s4 = inlined_call_operand.hbm [shape: f32[2,32], index: 4, kind: output, shape index: {}]
  %s5 = sld [smem:[#allocation0]]
  $region34: #{tpu_custom_call.1} parent=0
    _
  %s7 = ssub.s32 1, %s5
  %s8 = scalar_select 0, %s7, %s5
  $region1: #{tpu_custom_call.1} parent=0
    #allocation3 [shape = 'u8[32768]{0}', space=vmem, size = 0x8000, scoped, tag = 'input window, operand 0, single buffered']
    #allocation4 [shape = 's32[1]{0}', space=sflag, size = 0x4, scoped, tag = 'scoped memory for tpu_custom_call.1']
    #allocation5 [shape = 's32[1]{0}', space=sflag, size = 0x4, scoped, tag = 'scoped memory for tpu_custom_call.1']
    #allocation6 [shape = 'u8[16384]{0}', space=vmem, size = 0x4000, scoped, tag = 'input window, operand 2, single buffered']
    #allocation7 [shape = 's32[1]{0}', space=sflag, size = 0x4, scoped, tag = 'scoped memory for tpu_custom_call.1']
    #allocation8 [shape = 'u8[1024]{0}', space=vmem, size = 0x400, scoped, tag = 'output window, operand 0, single buffered']
    %9 = vsyncpa [#allocation4], 0
    %10 = vsyncpa [#allocation7], 0
    %11 = vsyncpa [#allocation5], 0
    // Predicated region
    $region2: #{tpu_custom_call.1} parent=1 // pred_check
      _
    $region3: #{tpu_custom_call.1} parent=1 // pred_check_branch
      %13 = sbr.rel (0) target = $region5
    $region4: #{tpu_custom_call.1} parent=1 // pred_region
      %s15 = ssub.s32 1024, 1024
      %16 = vsyncadd [#allocation4], %s15
      %s17 = sshll.u32 [#allocation3], 4
      %s18 = int_to_ptr.vmem [resolvable:$true] %s17
      %23 = dma.hbm_to_vmem [thread:$0]  %s0, 1024, %s18, [#allocation4], 128, 128, 8
    $region5: #{tpu_custom_call.1} parent=1 // pred_fallthru
      _
    // Predicated region
    $region6: #{tpu_custom_call.1} parent=1 // pred_check
      _
    $region7: #{tpu_custom_call.1} parent=1 // pred_check_branch
      %25 = sbr.rel (0) target = $region9
    $region8: #{tpu_custom_call.1} parent=1 // pred_region
      _
    $region9: #{tpu_custom_call.1} parent=1 // pred_fallthru
      _
    // Predicated region
    $region10: #{tpu_custom_call.1} parent=1 // pred_check
      _
    $region11: #{tpu_custom_call.1} parent=1 // pred_check_branch
      %27 = sbr.rel (0) target = $region13
    $region12: #{tpu_custom_call.1} parent=1 // pred_region
      %s29 = ssub.s32 512, 512
      %30 = vsyncadd [#allocation7], %s29
      %s31 = sshll.u32 [#allocation6], 4
      %s32 = int_to_ptr.vmem [resolvable:$true] %s31
      %37 = dma.hbm_to_vmem [thread:$0]  %s2, 512, %s32, [#allocation7], 128, 128, 8
    $region13: #{tpu_custom_call.1} parent=1 // pred_fallthru
      _
    // Predicated region
    $region14: #{tpu_custom_call.1} parent=1 // pred_check
      _
    $region15: #{tpu_custom_call.1} parent=1 // pred_check_branch
      %39 = sbr.rel (0) target = $region17
    $region16: #{tpu_custom_call.1} parent=1 // pred_region
      _
    $region17: #{tpu_custom_call.1} parent=1 // pred_fallthru
      _
    // Predicated region
    $region18: #{tpu_custom_call.1} parent=1 // pred_check
      _
    $region19: #{tpu_custom_call.1} parent=1 // pred_check_branch
      %41 = sbr.rel (0) target = $region21
    $region20: #{tpu_custom_call.1} parent=1 // pred_region
      %42 = dma.done [#allocation4], 1024
    $region21: #{tpu_custom_call.1} parent=1 // pred_fallthru
      _
    // Predicated region
    $region22: #{tpu_custom_call.1} parent=1 // pred_check
      _
    $region23: #{tpu_custom_call.1} parent=1 // pred_check_branch
      %44 = sbr.rel (0) target = $region25
    $region24: #{tpu_custom_call.1} parent=1 // pred_region
      %45 = dma.done [#allocation7], 512
    $region25: #{tpu_custom_call.1} parent=1 // pred_fallthru
      _
    %v46 = vld [vmem:[#allocation3] sm:$0xff]
    %v47 = vld [vmem:[#allocation3 + $0x8] sm:$0xff]
    %v48 = vld [vmem:[#allocation3 + $0x10] sm:$0xff]
    %v49 = vld [vmem:[#allocation3 + $0x18] sm:$0xff]
    %v50 = vld [vmem:[#allocation3 + $0x20] sm:$0xff]
    %v51 = vld [vmem:[#allocation3 + $0x28] sm:$0xff]
    %v52 = vld [vmem:[#allocation3 + $0x30] sm:$0xff]
    %v53 = vld [vmem:[#allocation3 + $0x38] sm:$0xff]
    %v54 = vld [vmem:[%s1] sm:$0x1]
    %vm55 = vcmask 261120
    %v57 = vsel %vm55, %v54, 0
    %59 = vmatprep.subr.mxu0 0.0
    %60 = vmatpush1.msra.mxu0 0.0
    %61 = vmatprep.subr.mxu0 0.0
    %62 = vmatpush1.msra.mxu0 0.0
    %63 = vmatprep.subr.mxu0 0.0
    %64 = vmatpush1.msra.mxu0 0.0
    %65 = vmatprep.subr.mxu0 0.0
    %66 = vmatpush1.msra.mxu0 0.0
    %67 = vmatprep.subr.mxu0 0.0
    %68 = vmatpush1.msra.mxu0 0.0
    %69 = vmatprep.subr.mxu0 0.0
    %70 = vmatpush1.msra.mxu0 0.0
    %71 = vmatprep.subr.mxu0 0.0
    %72 = vmatpush1.msra.mxu0 0.0
    %73 = vmatprep.subr.mxu0 0.0
    %74 = vmatpush1.msra.mxu0 0.0
    %75 = vmatprep.subr.mxu0 0.0
    %76 = vmatpush1.msra.mxu0 0.0
    %77 = vmatprep.subr.mxu0 0.0
    %78 = vmatpush1.msra.mxu0 0.0
    %79 = vmatprep.subr.mxu0 0.0
    %80 = vmatpush1.msra.mxu0 0.0
    %81 = vmatprep.subr.mxu0 0.0
    %82 = vmatpush1.msra.mxu0 0.0
    %83 = vmatprep.subr.mxu0 0.0
    %84 = vmatpush1.msra.mxu0 %v49
    %85 = vmatprep.subr.mxu0 0.0
    %86 = vmatpush1.msra.mxu0 %v48
    %87 = vmatprep.subr.mxu0 0.0
    %88 = vmatpush1.msra.mxu0 %v47
    %89 = vmatprep.subr.mxu0 0.0
    %90 = vmatpush1.msra.mxu0 %v46
    %91 = vmatprep.subr.mxu0 0.0
    %92 = vmatpush2.msra.mxu0 0.0
    %93 = vmatprep.subr.mxu0 0.0
    %94 = vmatpush2.msra.mxu0 0.0
    %95 = vmatprep.subr.mxu0 0.0
    %96 = vmatpush2.msra.mxu0 0.0
    %97 = vmatprep.subr.mxu0 0.0
    %98 = vmatpush2.msra.mxu0 0.0
    %99 = vmatprep.subr.mxu0 0.0
    %100 = vmatpush2.msra.mxu0 0.0
    %101 = vmatprep.subr.mxu0 0.0
    %102 = vmatpush2.msra.mxu0 0.0
    %103 = vmatprep.subr.mxu0 0.0
    %104 = vmatpush2.msra.mxu0 0.0
    %105 = vmatprep.subr.mxu0 0.0
    %106 = vmatpush2.msra.mxu0 0.0
    %107 = vmatprep.subr.mxu0 0.0
    %108 = vmatpush2.msra.mxu0 0.0
    %109 = vmatprep.subr.mxu0 0.0
    %110 = vmatpush2.msra.mxu0 0.0
    %111 = vmatprep.subr.mxu0 0.0
    %112 = vmatpush2.msra.mxu0 0.0
    %113 = vmatprep.subr.mxu0 0.0
    %114 = vmatpush2.msra.mxu0 0.0
    %115 = vmatprep.subr.mxu0 0.0
    %116 = vmatpush2.msra.mxu0 0.0
    %117 = vmatprep.subr.mxu0 0.0
    %118 = vmatpush2.msra.mxu0 0.0
    %119 = vmatprep.subr.mxu0 0.0
    %120 = vmatpush2.msra.mxu0 0.0
    %121 = vmatprep.subr.mxu0 0.0
    %122 = vmatpush2.msra.mxu0 0.0
    %123 = vmatprep.mubr.f32.mxu0 0.0
    %124 = vmatmul.mubr.f32.gmra.mxu0 %v57
    %v125 = vpop.f32.mrf.mxu0
    %v126 = vadd.f32 0.0, %v125
    %v127 = vpop.f32.mrf.mxu0
    %128 = vdwg.mxu0
    %129 = vmatprep.subr.mxu0 0.0
    %130 = vmatpush1.msra.mxu0 0.0
    %131 = vmatprep.subr.mxu0 0.0
    %132 = vmatpush1.msra.mxu0 0.0
    %133 = vmatprep.subr.mxu0 0.0
    %134 = vmatpush1.msra.mxu0 0.0
    %135 = vmatprep.subr.mxu0 0.0
    %136 = vmatpush1.msra.mxu0 0.0
    %137 = vmatprep.subr.mxu0 0.0
    %138 = vmatpush1.msra.mxu0 0.0
    %139 = vmatprep.subr.mxu0 0.0
    %140 = vmatpush1.msra.mxu0 0.0
    %141 = vmatprep.subr.mxu0 0.0
    %142 = vmatpush1.msra.mxu0 0.0
    %143 = vmatprep.subr.mxu0 0.0
    %144 = vmatpush1.msra.mxu0 0.0
    %145 = vmatprep.subr.mxu0 0.0
    %146 = vmatpush1.msra.mxu0 0.0
    %147 = vmatprep.subr.mxu0 0.0
    %148 = vmatpush1.msra.mxu0 0.0
    %149 = vmatprep.subr.mxu0 0.0
    %150 = vmatpush1.msra.mxu0 0.0
    %151 = vmatprep.subr.mxu0 0.0
    %152 = vmatpush1.msra.mxu0 0.0
    %153 = vmatprep.subr.mxu0 0.0
    %154 = vmatpush1.msra.mxu0 %v53
    %155 = vmatprep.subr.mxu0 0.0
    %156 = vmatpush1.msra.mxu0 %v52
    %157 = vmatprep.subr.mxu0 0.0
    %158 = vmatpush1.msra.mxu0 %v51
    %159 = vmatprep.subr.mxu0 0.0
    %160 = vmatpush1.msra.mxu0 %v50
    %161 = vmatprep.subr.mxu0 0.0
    %162 = vmatpush2.msra.mxu0 0.0
    %163 = vmatprep.subr.mxu0 0.0
    %164 = vmatpush2.msra.mxu0 0.0
    %165 = vmatprep.subr.mxu0 0.0
    %166 = vmatpush2.msra.mxu0 0.0
    %167 = vmatprep.subr.mxu0 0.0
    %168 = vmatpush2.msra.mxu0 0.0
    %169 = vmatprep.subr.mxu0 0.0
    %170 = vmatpush2.msra.mxu0 0.0
    %171 = vmatprep.subr.mxu0 0.0
    %172 = vmatpush2.msra.mxu0 0.0
    %173 = vmatprep.subr.mxu0 0.0
    %174 = vmatpush2.msra.mxu0 0.0
    %175 = vmatprep.subr.mxu0 0.0
    %176 = vmatpush2.msra.mxu0 0.0
    %177 = vmatprep.subr.mxu0 0.0
    %178 = vmatpush2.msra.mxu0 0.0
    %179 = vmatprep.subr.mxu0 0.0
    %180 = vmatpush2.msra.mxu0 0.0
    %181 = vmatprep.subr.mxu0 0.0
    %182 = vmatpush2.msra.mxu0 0.0
    %183 = vmatprep.subr.mxu0 0.0
    %184 = vmatpush2.msra.mxu0 0.0
    %185 = vmatprep.subr.mxu0 0.0
    %186 = vmatpush2.msra.mxu0 0.0
    %187 = vmatprep.subr.mxu0 0.0
    %188 = vmatpush2.msra.mxu0 0.0
    %189 = vmatprep.subr.mxu0 0.0
    %190 = vmatpush2.msra.mxu0 0.0
    %191 = vmatprep.subr.mxu0 0.0
    %192 = vmatpush2.msra.mxu0 0.0
    %193 = vmatprep.mubr.f32.mxu0 0.0
    %194 = vmatmul.mubr.f32.gmra.mxu0 %v57
    %v195 = vpop.f32.mrf.mxu0
    %v196 = vadd.f32 0.0, %v195
    %v197 = vpop.f32.mrf.mxu0
    %198 = vdwg.mxu0
    %vm199 = vcmask 516096
    %v200 = vsel %vm199, %v126, -inf
    %201 = vmax.xlane.f32.xlu0 %v200
    %v202 = vpop.xlane.xlu0 %201
    %v203 = vsel %vm199, %v196, -inf
    %204 = vmax.xlane.f32.xlu0 %v203
    %v205 = vpop.xlane.xlu0 %204
    %v206 = vsub.f32 %v126, %v202
    %v207 = vsub.f32 %v196, %v205
    %v208 = vmul.f32 %v206, 1.442695
    %v209 = vpow.pop %v208
    %v210 = vmul.f32 %v207, 1.442695
    %v211 = vpow.pop %v210
    %v212 = vsel %vm199, %v209, 0.0
    %213 = vadd.xlane.f32.xlu0 %v212
    %v214 = vpop.xlane.xlu0 %213
    %v215 = vsel %vm199, %v211, 0.0
    %216 = vadd.xlane.f32.xlu0 %v215
    %v217 = vpop.xlane.xlu0 %216
    %vm218 = vcmask 523264
    %v220 = vsel %vm218, %v209, 0
    %v223 = vsel %vm218, %v46, 0
    %v226 = vsel %vm218, %v47, 0
    %v229 = vsel %vm218, %v48, 0
    %v232 = vsel %vm218, %v49, 0
    %234 = vmatprep.subr.mxu0 0.0
    %235 = vmatpush1.xpose.msra.mxu0 0.0
    %236 = vmatprep.subr.mxu0 0.0
    %237 = vmatpush1.xpose.msra.mxu0 0.0
    %238 = vmatprep.subr.mxu0 0.0
    %239 = vmatpush1.xpose.msra.mxu0 0.0
    %240 = vmatprep.subr.mxu0 0.0
    %241 = vmatpush1.xpose.msra.mxu0 0.0
    %242 = vmatprep.subr.mxu0 0.0
    %243 = vmatpush1.xpose.msra.mxu0 0.0
    %244 = vmatprep.subr.mxu0 0.0
    %245 = vmatpush1.xpose.msra.mxu0 0.0
    %246 = vmatprep.subr.mxu0 0.0
    %247 = vmatpush1.xpose.msra.mxu0 0.0
    %248 = vmatprep.subr.mxu0 0.0
    %249 = vmatpush1.xpose.msra.mxu0 0.0
    %250 = vmatprep.subr.mxu0 0.0
    %251 = vmatpush1.xpose.msra.mxu0 0.0
    %252 = vmatprep.subr.mxu0 0.0
    %253 = vmatpush1.xpose.msra.mxu0 0.0
    %254 = vmatprep.subr.mxu0 0.0
    %255 = vmatpush1.xpose.msra.mxu0 0.0
    %256 = vmatprep.subr.mxu0 0.0
    %257 = vmatpush1.xpose.msra.mxu0 0.0
    %258 = vmatprep.subr.mxu0 0.0
    %259 = vmatpush1.xpose.msra.mxu0 %v232
    %260 = vmatprep.subr.mxu0 0.0
    %261 = vmatpush1.xpose.msra.mxu0 %v229
    %262 = vmatprep.subr.mxu0 0.0
    %263 = vmatpush1.xpose.msra.mxu0 %v226
    %264 = vmatprep.subr.mxu0 0.0
    %265 = vmatpush1.xpose.msra.mxu0 %v223
    %266 = vmatprep.subr.mxu0 0.0
    %267 = vmatpush2.xpose.msra.mxu0 0.0
    %268 = vmatprep.subr.mxu0 0.0
    %269 = vmatpush2.xpose.msra.mxu0 0.0
    %270 = vmatprep.subr.mxu0 0.0
    %271 = vmatpush2.xpose.msra.mxu0 0.0
    %272 = vmatprep.subr.mxu0 0.0
    %273 = vmatpush2.xpose.msra.mxu0 0.0
    %274 = vmatprep.subr.mxu0 0.0
    %275 = vmatpush2.xpose.msra.mxu0 0.0
    %276 = vmatprep.subr.mxu0 0.0
    %277 = vmatpush2.xpose.msra.mxu0 0.0
    %278 = vmatprep.subr.mxu0 0.0
    %279 = vmatpush2.xpose.msra.mxu0 0.0
    %280 = vmatprep.subr.mxu0 0.0
    %281 = vmatpush2.xpose.msra.mxu0 0.0
    %282 = vmatprep.subr.mxu0 0.0
    %283 = vmatpush2.xpose.msra.mxu0 0.0
    %284 = vmatprep.subr.mxu0 0.0
    %285 = vmatpush2.xpose.msra.mxu0 0.0
    %286 = vmatprep.subr.mxu0 0.0
    %287 = vmatpush2.xpose.msra.mxu0 0.0
    %288 = vmatprep.subr.mxu0 0.0
    %289 = vmatpush2.xpose.msra.mxu0 0.0
    %290 = vmatprep.subr.mxu0 0.0
    %291 = vmatpush2.xpose.msra.mxu0 0.0
    %292 = vmatprep.subr.mxu0 0.0
    %293 = vmatpush2.xpose.msra.mxu0 0.0
    %294 = vmatprep.subr.mxu0 0.0
    %295 = vmatpush2.xpose.msra.mxu0 0.0
    %296 = vmatprep.subr.mxu0 0.0
    %297 = vmatpush2.xpose.msra.mxu0 0.0
    %298 = vmatprep.mubr.f32.mxu0 0.0
    %299 = vmatmul.mubr.f32.gmra.mxu0 %v220
    %v300 = vpop.f32.mrf.mxu0
    %v301 = vadd.f32 0.0, %v300
    %v302 = vpop.f32.mrf.mxu0
    %303 = vdwg.mxu0
    %v305 = vsel %vm218, %v211, 0
    %v308 = vsel %vm218, %v50, 0
    %v311 = vsel %vm218, %v51, 0
    %v314 = vsel %vm218, %v52, 0
    %v317 = vsel %vm218, %v53, 0
    %319 = vmatprep.subr.mxu0 0.0
    %320 = vmatpush1.xpose.msra.mxu0 0.0
    %321 = vmatprep.subr.mxu0 0.0
    %322 = vmatpush1.xpose.msra.mxu0 0.0
    %323 = vmatprep.subr.mxu0 0.0
    %324 = vmatpush1.xpose.msra.mxu0 0.0
    %325 = vmatprep.subr.mxu0 0.0
    %326 = vmatpush1.xpose.msra.mxu0 0.0
    %327 = vmatprep.subr.mxu0 0.0
    %328 = vmatpush1.xpose.msra.mxu0 0.0
    %329 = vmatprep.subr.mxu0 0.0
    %330 = vmatpush1.xpose.msra.mxu0 0.0
    %331 = vmatprep.subr.mxu0 0.0
    %332 = vmatpush1.xpose.msra.mxu0 0.0
    %333 = vmatprep.subr.mxu0 0.0
    %334 = vmatpush1.xpose.msra.mxu0 0.0
    %335 = vmatprep.subr.mxu0 0.0
    %336 = vmatpush1.xpose.msra.mxu0 0.0
    %337 = vmatprep.subr.mxu0 0.0
    %338 = vmatpush1.xpose.msra.mxu0 0.0
    %339 = vmatprep.subr.mxu0 0.0
    %340 = vmatpush1.xpose.msra.mxu0 0.0
    %341 = vmatprep.subr.mxu0 0.0
    %342 = vmatpush1.xpose.msra.mxu0 0.0
    %343 = vmatprep.subr.mxu0 0.0
    %344 = vmatpush1.xpose.msra.mxu0 %v317
    %345 = vmatprep.subr.mxu0 0.0
    %346 = vmatpush1.xpose.msra.mxu0 %v314
    %347 = vmatprep.subr.mxu0 0.0
    %348 = vmatpush1.xpose.msra.mxu0 %v311
    %349 = vmatprep.subr.mxu0 0.0
    %350 = vmatpush1.xpose.msra.mxu0 %v308
    %351 = vmatprep.subr.mxu0 0.0
    %352 = vmatpush2.xpose.msra.mxu0 0.0
    %353 = vmatprep.subr.mxu0 0.0
    %354 = vmatpush2.xpose.msra.mxu0 0.0
    %355 = vmatprep.subr.mxu0 0.0
    %356 = vmatpush2.xpose.msra.mxu0 0.0
    %357 = vmatprep.subr.mxu0 0.0
    %358 = vmatpush2.xpose.msra.mxu0 0.0
    %359 = vmatprep.subr.mxu0 0.0
    %360 = vmatpush2.xpose.msra.mxu0 0.0
    %361 = vmatprep.subr.mxu0 0.0
    %362 = vmatpush2.xpose.msra.mxu0 0.0
    %363 = vmatprep.subr.mxu0 0.0
    %364 = vmatpush2.xpose.msra.mxu0 0.0
    %365 = vmatprep.subr.mxu0 0.0
    %366 = vmatpush2.xpose.msra.mxu0 0.0
    %367 = vmatprep.subr.mxu0 0.0
    %368 = vmatpush2.xpose.msra.mxu0 0.0
    %369 = vmatprep.subr.mxu0 0.0
    %370 = vmatpush2.xpose.msra.mxu0 0.0
    %371 = vmatprep.subr.mxu0 0.0
    %372 = vmatpush2.xpose.msra.mxu0 0.0
    %373 = vmatprep.subr.mxu0 0.0
    %374 = vmatpush2.xpose.msra.mxu0 0.0
    %375 = vmatprep.subr.mxu0 0.0
    %376 = vmatpush2.xpose.msra.mxu0 0.0
    %377 = vmatprep.subr.mxu0 0.0
    %378 = vmatpush2.xpose.msra.mxu0 0.0
    %379 = vmatprep.subr.mxu0 0.0
    %380 = vmatpush2.xpose.msra.mxu0 0.0
    %381 = vmatprep.subr.mxu0 0.0
    %382 = vmatpush2.xpose.msra.mxu0 0.0
    %383 = vmatprep.mubr.f32.mxu0 0.0
    %384 = vmatmul.mubr.f32.gmra.mxu0 %v305
    %v385 = vpop.f32.mrf.mxu0
    %v386 = vadd.f32 0.0, %v385
    %v387 = vpop.f32.mrf.mxu0
    %388 = vdwg.mxu0
    %v389 = vrcp.pop %v214
    %v390 = vrcp.pop %v217
    %v391 = vmul.f32 %v301, %v389
    %v392 = vmul.f32 %v386, %v390
    %vm393 = vcmask 253952
    %394 = vst.msk [vmem:[#allocation2] sm:$0x1] %vm393, %v391
    %395 = vst.msk [vmem:[#allocation2 + $0x1] sm:$0x1] %vm393, %v392
    %v396 = vld [vmem:[#allocation2] sm:$0x3]
    %v397 = vld [vmem:[#allocation6] sm:$0xff]
    %v398 = vld [vmem:[#allocation6 + $0x8] sm:$0xff]
    %v399 = vld [vmem:[#allocation6 + $0x10] sm:$0xff]
    %v400 = vld [vmem:[#allocation6 + $0x18] sm:$0xff]
    %v401 = vld [vmem:[%s3] sm:$0x1]
    %v403 = vlaneseq
    %v404 = vshrl.u32 %v403, 7
    %v405 = vsub.s32 0, %v404
    %v406 = vrot.slane %v401, %v405
    %v409 = vsel %vm55, %v396, 0
    %411 = vmatprep.subr.mxu0 0.0
    %412 = vmatpush1.msra.mxu0 0.0
    %413 = vmatprep.subr.mxu0 0.0
    %414 = vmatpush1.msra.mxu0 0.0
    %415 = vmatprep.subr.mxu0 0.0
    %416 = vmatpush1.msra.mxu0 0.0
    %417 = vmatprep.subr.mxu0 0.0
    %418 = vmatpush1.msra.mxu0 0.0
    %419 = vmatprep.subr.mxu0 0.0
    %420 = vmatpush1.msra.mxu0 0.0
    %421 = vmatprep.subr.mxu0 0.0
    %422 = vmatpush1.msra.mxu0 0.0
    %423 = vmatprep.subr.mxu0 0.0
    %424 = vmatpush1.msra.mxu0 0.0
    %425 = vmatprep.subr.mxu0 0.0
    %426 = vmatpush1.msra.mxu0 0.0
    %427 = vmatprep.subr.mxu0 0.0
    %428 = vmatpush1.msra.mxu0 0.0
    %429 = vmatprep.subr.mxu0 0.0
    %430 = vmatpush1.msra.mxu0 0.0
    %431 = vmatprep.subr.mxu0 0.0
    %432 = vmatpush1.msra.mxu0 0.0
    %433 = vmatprep.subr.mxu0 0.0
    %434 = vmatpush1.msra.mxu0 0.0
    %435 = vmatprep.subr.mxu0 0.0
    %436 = vmatpush1.msra.mxu0 %v400
    %437 = vmatprep.subr.mxu0 0.0
    %438 = vmatpush1.msra.mxu0 %v399
    %439 = vmatprep.subr.mxu0 0.0
    %440 = vmatpush1.msra.mxu0 %v398
    %441 = vmatprep.subr.mxu0 0.0
    %442 = vmatpush1.msra.mxu0 %v397
    %443 = vmatprep.subr.mxu0 0.0
    %444 = vmatpush2.msra.mxu0 0.0
    %445 = vmatprep.subr.mxu0 0.0
    %446 = vmatpush2.msra.mxu0 0.0
    %447 = vmatprep.subr.mxu0 0.0
    %448 = vmatpush2.msra.mxu0 0.0
    %449 = vmatprep.subr.mxu0 0.0
    %450 = vmatpush2.msra.mxu0 0.0
    %451 = vmatprep.subr.mxu0 0.0
    %452 = vmatpush2.msra.mxu0 0.0
    %453 = vmatprep.subr.mxu0 0.0
    %454 = vmatpush2.msra.mxu0 0.0
    %455 = vmatprep.subr.mxu0 0.0
    %456 = vmatpush2.msra.mxu0 0.0
    %457 = vmatprep.subr.mxu0 0.0
    %458 = vmatpush2.msra.mxu0 0.0
    %459 = vmatprep.subr.mxu0 0.0
    %460 = vmatpush2.msra.mxu0 0.0
    %461 = vmatprep.subr.mxu0 0.0
    %462 = vmatpush2.msra.mxu0 0.0
    %463 = vmatprep.subr.mxu0 0.0
    %464 = vmatpush2.msra.mxu0 0.0
    %465 = vmatprep.subr.mxu0 0.0
    %466 = vmatpush2.msra.mxu0 0.0
    %467 = vmatprep.subr.mxu0 0.0
    %468 = vmatpush2.msra.mxu0 0.0
    %469 = vmatprep.subr.mxu0 0.0
    %470 = vmatpush2.msra.mxu0 0.0
    %471 = vmatprep.subr.mxu0 0.0
    %472 = vmatpush2.msra.mxu0 0.0
    %473 = vmatprep.subr.mxu0 0.0
    %474 = vmatpush2.msra.mxu0 0.0
    %475 = vmatprep.mubr.f32.mxu0 0.0
    %476 = vmatmul.mubr.f32.gmra.mxu0 %v409
    %v477 = vpop.f32.mrf.mxu0
    %v478 = vadd.f32 %v406, %v477
    %v479 = vpop.f32.mrf.mxu0
    %480 = vdwg.mxu0
    %vm481 = vcmask 254976
    %482 = vst.msk [vmem:[#allocation8] sm:$0x3] %vm481, %v478
    // Predicated region
    $region26: #{tpu_custom_call.1} parent=1 // pred_check
      _
    $region27: #{tpu_custom_call.1} parent=1 // pred_check_branch
      %484 = sbr.rel (0) target = $region29
    $region28: #{tpu_custom_call.1} parent=1 // pred_region
      %s486 = ssub.s32 32, 32
      %487 = vsyncadd [#allocation5], %s486
      %s489 = sshll.u32 [#allocation8], 4
      %s490 = int_to_ptr.vmem [resolvable:$true] %s489
      %492 = dma.vmem_to_hbm [thread:$0]  %s490, 32, %s4, [#allocation5]
    $region29: #{tpu_custom_call.1} parent=1 // pred_fallthru
      _
    // Predicated region
    $region30: #{tpu_custom_call.1} parent=1 // pred_check
      _
    $region31: #{tpu_custom_call.1} parent=1 // pred_check_branch
      %494 = sbr.rel (0) target = $region33
    $region32: #{tpu_custom_call.1} parent=1 // pred_region
      %495 = dma.done [#allocation5], 32
    $region33: #{tpu_custom_call.1} parent=1 // pred_fallthru
      _
    %496 = vsyncpa [#allocation4], 1
    %497 = vsyncpa [#allocation7], 1
    %498 = vsyncpa [#allocation5], 1

</llo_original>
